<compile_context>
chip_gen: v5e
topology: v5e:2x2
jax: 0.10.0
libtpu: 0.0.40
codegen_flags: <defaults>
</compile_context>

<pallas_src>
import jax
import jax.numpy as jnp
from jax.experimental import pallas as pl
from jax.experimental.pallas import tpu as pltpu


def matmul_kernel(a_ref, b_ref, o_ref):
    # Output block is resident in VMEM across the K grid axis (its index_map
    # returns (i, j) for all k), so accumulate straight into it (f32).
    @pl.when(pl.program_id(2) == 0)
    def _():
        o_ref[...] = jnp.zeros_like(o_ref)

    o_ref[...] += jnp.dot(
        a_ref[...], b_ref[...], preferred_element_type=jnp.float32
    )


def _round_up(x: int, m: int) -> int:
    return ((x + m - 1) // m) * m


def _vmem_capacity_bytes() -> int:
    try:
        return int(pltpu.get_tpu_info().vmem_capacity_bytes)
    except Exception:
        return 64 << 20  # conservative (v7x-sized) fallback


def _pick_tile(n: int, candidates, min_blocks: int = 1) -> int:
    """Largest candidate that evenly divides n (preferring >= min_blocks blocks)."""
    for c in candidates:
        if c <= n and n % c == 0 and n // c >= min_blocks:
            return c
    for c in candidates:
        if c <= n and n % c == 0:
            return c
    # Only reachable for n < 128; a full-dim block is always legal.
    return n


def _tile_config(n: int):
    """Return (tm, tn, tk, vmem_limit_bytes) for the current TPU generation."""
    vmem_cap = _vmem_capacity_bytes()
    if vmem_cap >= (100 << 20):
        # v5e / v6e: 128 MiB physical VMEM.  Big output tiles minimize HBM
        # re-reads (biggest lever on v5e's ~0.82 TB/s HBM); big tk shrinks
        # the grid and its per-step overhead.
        cap = 100 << 20
        tm = _pick_tile(n, (1024, 512, 256, 128))
        tn = _pick_tile(n, (1024, 512, 256, 128))
        tk = _pick_tile(n, (2048, 1024, 512, 256, 128))
    else:
        # v7x: 64 MiB physical VMEM (32 MiB scoped default).  Keep the
        # working set well under ~48 MiB and keep the first parallel grid
        # axis >= 2 blocks so both TensorCores get work.
        cap = 48 << 20
        tm = _pick_tile(n, (1024, 512, 256, 128), min_blocks=2)
        tn = _pick_tile(n, (1024, 512, 256, 128))
        tk = _pick_tile(n, (1024, 512, 256, 128))

    def working_set(tm_, tn_, tk_):
        # f32, double-buffered A, B and output tiles.
        return 4 * 2 * (tm_ * tk_ + tk_ * tn_ + tm_ * tn_)

    # Shrink tk first (doesn't change HBM traffic), then tn, then tm, until
    # the double-buffered working set fits the per-generation budget.
    while working_set(tm, tn, tk) > cap and tk > 128:
        tk //= 2
    while working_set(tm, tn, tk) > cap and tn > 128:
        tn //= 2
    while working_set(tm, tn, tk) > cap and tm > 128:
        tm //= 2

    need = working_set(tm, tn, tk)
    vmem_limit = min(cap, max(32 << 20, (need * 5) // 4))
    return tm, tn, tk, vmem_limit


def matmul(a: jax.Array, b: jax.Array) -> jax.Array:
    """C = A @ B for square float32 matrices, tiled on the MXU."""
    assert a.ndim == 2 and b.ndim == 2
    N, K = a.shape
    K2, M = b.shape
    assert N == K == K2 == M, "reference kernel is for square (N, N) matrices"

    if a.dtype != jnp.float32:
        a = a.astype(jnp.float32)
    if b.dtype != jnp.float32:
        b = b.astype(jnp.float32)

    # (8, 128) tiling rule: pad non-128-divisible N up to a multiple of 256
    # (zero padding is exact for matmul) instead of using a full-array block.
    Np = N if N % 128 == 0 else _round_up(N, 256)
    if Np != N:
        pad = Np - N
        a = jnp.pad(a, ((0, pad), (0, pad)))
        b = jnp.pad(b, ((0, pad), (0, pad)))

    tm, tn, tk, vmem_limit = _tile_config(Np)
    grid = (Np // tm, Np // tn, Np // tk)

    cost = pl.CostEstimate(
        flops=2 * Np * Np * Np,
        transcendentals=0,
        # A is read (Np/tn) times, B (Np/tm) times, C written once.
        bytes_accessed=4 * Np * Np * (grid[1] + grid[0] + 1),
    )

    out = pl.pallas_call(
        matmul_kernel,
        out_shape=jax.ShapeDtypeStruct((Np, Np), jnp.float32),
        grid_spec=pltpu.PrefetchScalarGridSpec(
            num_scalar_prefetch=0,
            grid=grid,
            in_specs=[
                pl.BlockSpec((tm, tk), lambda i, j, k: (i, k)),
                pl.BlockSpec((tk, tn), lambda i, j, k: (k, j)),
            ],
            out_specs=pl.BlockSpec((tm, tn), lambda i, j, k: (i, j)),
        ),
        compiler_params=pltpu.CompilerParams(
            dimension_semantics=("parallel", "parallel", "arbitrary"),
            vmem_limit_bytes=vmem_limit,
        ),
        cost_estimate=cost,
    )(a, b)

    if Np != N:
        out = out[:N, :N]
    return out


if __name__ == "__main__":
    key = jax.random.PRNGKey(0)
    ka, kb, kc, kd = jax.random.split(key, 4)

    # Small, 128-aligned square problem.
    N = 256
    A = jax.random.normal(ka, (N, N), dtype=jnp.float32)
    B = jax.random.normal(kb, (N, N), dtype=jnp.float32)
    C = jax.block_until_ready(matmul(A, B))
    C_ref = jnp.dot(A, B)
    assert jnp.allclose(C, C_ref, atol=1e-3, rtol=1e-3), "mismatch (aligned N)"

    # Non-128-divisible N exercises the zero-pad / slice path.
    N2 = 192
    A2 = jax.random.normal(kc, (N2, N2), dtype=jnp.float32)
    B2 = jax.random.normal(kd, (N2, N2), dtype=jnp.float32)
    C2 = jax.block_until_ready(matmul(A2, B2))
    C2_ref = jnp.dot(A2, B2)
    assert jnp.allclose(C2, C2_ref, atol=1e-3, rtol=1e-3), "mismatch (padded N)"

    print("KERNEL_OK")
</pallas_src>

<mosaic_0001>
module attributes {stable_mosaic.version = 11 : i64} {
  func.func @matmul_kernel(%arg0: i32, %arg1: i32, %arg2: i32, %arg3: memref<128x256xf32, #tpu.memory_space<vmem>>, %arg4: memref<256x256xf32, #tpu.memory_space<vmem>>, %arg5: memref<128x256xf32, #tpu.memory_space<vmem>>) attributes {dimension_semantics = [#tpu.dimension_semantics<parallel>, #tpu.dimension_semantics<parallel>, #tpu.dimension_semantics<arbitrary>], iteration_bounds = array<i64: 2, 1, 1>, scalar_prefetch = 0 : i64, scratch_operands = 0 : i64, tpu.core_type = #tpu.core_type<tc>, window_params = [{transform_indices = @transform_0, window_bounds = array<i64: 128, 256>}, {transform_indices = @transform_1, window_bounds = array<i64: 256, 256>}, {transform_indices = @transform_2, window_bounds = array<i64: 128, 256>}]} {
    %c0_i32 = arith.constant 0 : i32
    %0 = arith.cmpi eq, %arg2, %c0_i32 : i32
    %1 = arith.extui %0 : i1 to i32
    %c0_i32_0 = arith.constant 0 : i32
    %2 = arith.cmpi ne, %1, %c0_i32_0 : i32
    scf.if %2 {
      %cst_8 = arith.constant 0.000000e+00 : f32
      %9 = vector.broadcast %cst_8 : f32 to vector<128x256xf32>
      %c0_9 = arith.constant 0 : index
      %c0_10 = arith.constant 0 : index
      %10 = vector.load %arg5[%c0_9, %c0_10] : memref<128x256xf32, #tpu.memory_space<vmem>>, vector<128x256xf32>
      tpu.vector_store %arg5[%c0_9, %c0_10], %9 {strides = array<i32>} : memref<128x256xf32, #tpu.memory_space<vmem>>, vector<128x256xf32>,
    } else {
    }
    %c0 = arith.constant 0 : index
    %c0_1 = arith.constant 0 : index
    %3 = vector.load %arg5[%c0, %c0_1] : memref<128x256xf32, #tpu.memory_space<vmem>>, vector<128x256xf32>
    %c0_2 = arith.constant 0 : index
    %c0_3 = arith.constant 0 : index
    %4 = vector.load %arg3[%c0_2, %c0_3] : memref<128x256xf32, #tpu.memory_space<vmem>>, vector<128x256xf32>
    %c0_4 = arith.constant 0 : index
    %c0_5 = arith.constant 0 : index
    %5 = vector.load %arg4[%c0_4, %c0_5] : memref<256x256xf32, #tpu.memory_space<vmem>>, vector<256x256xf32>
    %cst = arith.constant dense<0.000000e+00> : vector<128x256xf32>
    %6 = tpu.matmul %4, %5, %cst {dimension_numbers = #tpu.dot_dimension_numbers<[1], [0], [0], [1], [0, 0, 1, 1], [], []>} : vector<128x256xf32>, vector<256x256xf32>, vector<128x256xf32> -> vector<128x256xf32>
    %7 = arith.addf %3, %6 : vector<128x256xf32>
    %c0_6 = arith.constant 0 : index
    %c0_7 = arith.constant 0 : index
    %8 = vector.load %arg5[%c0_6, %c0_7] : memref<128x256xf32, #tpu.memory_space<vmem>>, vector<128x256xf32>
    tpu.vector_store %arg5[%c0_6, %c0_7], %7 {strides = array<i32>} : memref<128x256xf32, #tpu.memory_space<vmem>>, vector<128x256xf32>,
    return
  }
  func.func @transform_0(%arg0: i32, %arg1: i32, %arg2: i32) -> (i32, i32) {
    %c0_i32 = arith.constant 0 : i32
    return %arg0, %arg2 : i32, i32
  }
  func.func @transform_1(%arg0: i32, %arg1: i32, %arg2: i32) -> (i32, i32) {
    %c0_i32 = arith.constant 0 : i32
    return %arg2, %arg1 : i32, i32
  }
  func.func @transform_2(%arg0: i32, %arg1: i32, %arg2: i32) -> (i32, i32) {
    %c0_i32 = arith.constant 0 : i32
    return %arg0, %arg1 : i32, i32
  }
}

</mosaic_0001>

<llo_original>
// kernel: tpu_custom_call.1
$region0: #{tpu_custom_call.1}
  #allocation0 [shape = 'u32[]', space=smem, size = 0x4, offset = 0x4, fixed_abs, tag = 'smem constant byte address 0x4 - core index']
  #allocation1 [shape = 'u32[72,128]{1,0:T(1,128)}', space=vmem, size = 0x9000, scoped, tag = 'internal scratch']
  %s0 = inlined_call_operand.hbm [shape: f32[256,256], index: 0, kind: input, shape index: {}]
  %s1 = inlined_call_operand.hbm [shape: f32[256,256], index: 1, kind: input, shape index: {}]
  %s2 = inlined_call_operand.hbm [shape: f32[256,256], index: 2, kind: output, shape index: {}]
  %s3 = sld [smem:[#allocation0]]
  $region53: #{tpu_custom_call.1} parent=0
    _
  %s5 = ssub.s32 1, %s3
  %s6 = scalar_select 0, %s5, %s3
  $region1: #{tpu_custom_call.1} parent=0
    #allocation2 [shape = 'u8[262144]{0}', space=vmem, size = 0x40000, scoped, tag = 'input window, operand 0']
    #allocation3 [shape = 's32[2]{0}', space=sflag, size = 0x8, scoped, tag = 'scoped memory for tpu_custom_call.1']
    #allocation4 [shape = 's32[2]{0}', space=sflag, size = 0x8, scoped, tag = 'scoped memory for tpu_custom_call.1']
    #allocation5 [shape = 'u8[262144]{0}', space=vmem, size = 0x40000, scoped, tag = 'input window, operand 1, single buffered']
    #allocation6 [shape = 's32[1]{0}', space=sflag, size = 0x4, scoped, tag = 'scoped memory for tpu_custom_call.1']
    #allocation7 [shape = 'u8[262144]{0}', space=vmem, size = 0x40000, scoped, tag = 'output window, operand 0']
    %7 = vsyncpa [#allocation3], 0
    %s8 = scalar_lea.sflag [#allocation3], 1
    %9 = vsyncpa %s8, 0
    %10 = vsyncpa [#allocation6], 0
    %11 = vsyncpa [#allocation4], 0
    %s12 = scalar_lea.sflag [#allocation4], 1
    %13 = vsyncpa %s12, 0
    loop: start=0, step=1, limit=4
    $region2: #{tpu_custom_call.1} parent=1 // loop_pre_header
      _
    $region3: #{tpu_custom_call.1} parent=1 // loop_header
      %s15 = sphi 0, %s19
      %p16 = scmp.ge.s32.totalorder %s15, 4
      %s22 = sphi 0, %s41
      %s23 = sphi 0, %s37
      %s24 = sphi 0, %s33
      %s25 = sphi 0, %s22
      %s26 = sphi 0, %s23
      %s27 = sphi 0, %s24
      %s28 = sphi 0, %s25
      %s29 = sphi 0, %s26
      %s30 = sphi 0, %s27
      %s46 = sphi 0, %s48
      %s49 = sphi 0, %s46
      %s50 = sphi 0, %s49
      %s66 = sphi 0, %s50
      %s74 = sphi 0, %s76
      %s77 = sphi 0, %s74
      %s78 = sphi 0, %s77
      %s94 = sphi 0, %s78
      %s102 = sphi 0, %s104
      %s105 = sphi 0, %s102
      %s106 = sphi 0, %s105
      %s122 = sphi 0, %s106
    $region4: #{tpu_custom_call.1} parent=1 // loop_header_branch
      %18 = sbr.rel (%p16) target = $region8
    $region5: #{tpu_custom_call.1} parent=1 // loop_body
      %s20 = ssub.s32 %s15, 1
      %s21 = ssub.s32 %s15, 2
      %s31 = sadd.s32 1, %s24
      %p32 = scmp.ge.s32.totalorder %s31, 1
      %s33 = scalar_select %p32, 0, %s31
      %s34 = sadd.s32 1, %s23
      %s35 = scalar_select %p32, %s34, %s23
      %p36 = scmp.ge.s32.totalorder %s35, 1
      %s37 = scalar_select %p36, 0, %s35
      %s38 = sadd.s32 1, %s22
      %s39 = scalar_select %p36, %s38, %s22
      %p40 = scmp.ge.s32.totalorder %s39, 2
      %s41 = scalar_select %p40, 0, %s39
      %s42 = ssub.s32 %s22, %s41
      %s43 = ssub.s32 %s24, %s33
      %s44 = sor.u32 %s42, %s43
      %p45 = scmp.eq.s32.totalorder %s44, 0
      %s47 = sadd.s32 %s46, 1
      %s48 = scalar_select %p45, %s46, %s47
      %p51 = pneg %p45
      %p52 = scmp.eq.s32.totalorder %s15, 1
      %p53 = por %p51, %p52
      %p54 = scmp.ne.s32.totalorder %s46, %s49
      %p55 = scmp.eq.s32.totalorder %s15, 0
      %p56 = por %p54, %p55
      %p57 = scmp.ne.s32.totalorder %s46, %s49
      %p58 = scmp.eq.s32.totalorder %s20, 1
      %p59 = por %p57, %p58
      %p60 = scmp.ne.s32.totalorder %s49, %s50
      %p61 = scmp.eq.s32.totalorder %s20, 0
      %p62 = por %p60, %p61
      %p63 = scmp.ne.s32.totalorder %s49, %s50
      %p64 = scmp.eq.s32.totalorder %s21, 1
      %p65 = por %p63, %p64
      %p67 = scmp.ne.s32.totalorder %s50, %s66
      %p68 = scmp.eq.s32.totalorder %s21, 0
      %p69 = por %p67, %p68
      %s70 = ssub.s32 %s24, %s33
      %s71 = ssub.s32 %s23, %s37
      %s72 = sor.u32 %s70, %s71
      %p73 = scmp.eq.s32.totalorder %s72, 0
      %s75 = sadd.s32 %s74, 1
      %s76 = scalar_select %p73, %s74, %s75
      %p79 = pneg %p73
      %p80 = scmp.eq.s32.totalorder %s15, 1
      %p81 = por %p79, %p80
      %p82 = scmp.ne.s32.totalorder %s74, %s77
      %p83 = scmp.eq.s32.totalorder %s15, 0
      %p84 = por %p82, %p83
      %p85 = scmp.ne.s32.totalorder %s74, %s77
      %p86 = scmp.eq.s32.totalorder %s20, 1
      %p87 = por %p85, %p86
      %p88 = scmp.ne.s32.totalorder %s77, %s78
      %p89 = scmp.eq.s32.totalorder %s20, 0
      %p90 = por %p88, %p89
      %p91 = scmp.ne.s32.totalorder %s77, %s78
      %p92 = scmp.eq.s32.totalorder %s21, 1
      %p93 = por %p91, %p92
      %p95 = scmp.ne.s32.totalorder %s78, %s94
      %p96 = scmp.eq.s32.totalorder %s21, 0
      %p97 = por %p95, %p96
      %s98 = ssub.s32 %s22, %s41
      %s99 = ssub.s32 %s23, %s37
      %s100 = sor.u32 %s98, %s99
      %p101 = scmp.eq.s32.totalorder %s100, 0
      %s103 = sadd.s32 %s102, 1
      %s104 = scalar_select %p101, %s102, %s103
      %p107 = pneg %p101
      %p108 = scmp.eq.s32.totalorder %s15, 1
      %p109 = por %p107, %p108
      %p110 = scmp.ne.s32.totalorder %s102, %s105
      %p111 = scmp.eq.s32.totalorder %s15, 0
      %p112 = por %p110, %p111
      %p113 = scmp.ne.s32.totalorder %s102, %s105
      %p114 = scmp.eq.s32.totalorder %s20, 1
      %p115 = por %p113, %p114
      %p116 = scmp.ne.s32.totalorder %s105, %s106
      %p117 = scmp.eq.s32.totalorder %s20, 0
      %p118 = por %p116, %p117
      %p119 = scmp.ne.s32.totalorder %s105, %s106
      %p120 = scmp.eq.s32.totalorder %s21, 1
      %p121 = por %p119, %p120
      %p123 = scmp.ne.s32.totalorder %s106, %s122
      %p124 = scmp.eq.s32.totalorder %s21, 0
      %p125 = por %p123, %p124
      %p126 = scmp.le.s32.totalorder 1, %s15
      %p127 = scmp.lt.s32.totalorder %s15, 3
      %p128 = pnand %p126, %p127
      %p129 = pneg %p128
      // Predicated region
      $region9: #{tpu_custom_call.1} parent=5 // pred_check
        _
      $region10: #{tpu_custom_call.1} parent=5 // pred_check_branch
        %131 = sbr.rel (%p128) target = $region12
      $region11: #{tpu_custom_call.1} parent=5 // pred_region
        %s132 = ssub.s32 %s15, 1
        // Predicated region
        $region13: #{tpu_custom_call.1} parent=11 // pred_check
          %p133 = pneg %p90
        $region14: #{tpu_custom_call.1} parent=11 // pred_check_branch
          %135 = sbr.rel (%p133) target = $region16
        $region15: #{tpu_custom_call.1} parent=11 // pred_region
          %s136 = smul.u32 32, %s27
          %s137 = smul.u32 2, %s26
          %139 = vsyncadd [#allocation6], 0
          %s140 = smul.addr %s136, 2
          %s141 = sadd.s32 %s137, %s140
          %s142 = smul.addr %s141, 8
          %s143 = scalar_lea.hbm %s1, %s142
          %s144 = sshll.u32 %s143, 4
          %s145 = int_to_ptr.hbm [resolvable:$true] %s144
          %s146 = sshll.u32 [#allocation5], 4
          %s147 = int_to_ptr.vmem [resolvable:$true] %s146
          %152 = dma.hbm_to_vmem [thread:$0]  %s145, 8192, %s147, [#allocation6], 256, 256, 16
        $region16: #{tpu_custom_call.1} parent=11 // pred_fallthru
          _
      $region12: #{tpu_custom_call.1} parent=5 // pred_fallthru
        _
      %p153 = scmp.lt.s32.totalorder %s15, 2
      // Predicated region
      $region17: #{tpu_custom_call.1} parent=5 // pred_check
        %p154 = pneg %p153
      $region18: #{tpu_custom_call.1} parent=5 // pred_check_branch
        %156 = sbr.rel (%p154) target = $region20
      $region19: #{tpu_custom_call.1} parent=5 // pred_region
        // Predicated region
        $region21: #{tpu_custom_call.1} parent=19 // pred_check
          %p157 = pneg %p56
        $region22: #{tpu_custom_call.1} parent=19 // pred_check_branch
          %159 = sbr.rel (%p157) target = $region24
        $region23: #{tpu_custom_call.1} parent=19 // pred_region
          %s160 = sand.u32 %s46, 1
          %s161 = scalar_lea.sflag [#allocation3], %s160
          %s162 = sand.u32 %s46, 1
          %s163 = smul.addr %s162, 256
          %s164 = scalar_lea.vmem [#allocation2], %s163
          %s165 = smul.u32 16, %s22
          %s166 = smul.u32 2, %s24
          %168 = vsyncadd %s161, 0
          %s169 = smul.addr %s165, 2
          %s170 = sadd.s32 %s166, %s169
          %s171 = smul.addr %s170, 8
          %s172 = scalar_lea.hbm %s0, %s171
          %s173 = sshll.u32 %s172, 4
          %s174 = int_to_ptr.hbm [resolvable:$true] %s173
          %s175 = sshll.u32 %s164, 4
          %s176 = int_to_ptr.vmem [resolvable:$true] %s175
          %181 = dma.hbm_to_vmem [thread:$0]  %s174, 4096, %s176, %s161, 256, 256, 16
        $region24: #{tpu_custom_call.1} parent=19 // pred_fallthru
          _
      $region20: #{tpu_custom_call.1} parent=5 // pred_fallthru
        _
      %p182 = scmp.le.s32.totalorder 1, %s15
      %p183 = scmp.lt.s32.totalorder %s15, 3
      %p184 = pnand %p182, %p183
      %p185 = pneg %p184
      // Predicated region
      $region25: #{tpu_custom_call.1} parent=5 // pred_check
        _
      $region26: #{tpu_custom_call.1} parent=5 // pred_check_branch
        %187 = sbr.rel (%p184) target = $region28
      $region27: #{tpu_custom_call.1} parent=5 // pred_region
        %s188 = ssub.s32 %s15, 1
        %s189 = sand.u32 %s49, 1
        %s190 = scalar_lea.sflag [#allocation3], %s189
        %s191 = sand.u32 %s49, 1
        %s192 = smul.addr %s191, 256
        %s193 = scalar_lea.vmem [#allocation2], %s192
        // Predicated region
        $region29: #{tpu_custom_call.1} parent=27 // pred_check
          %p194 = pneg %p62
        $region30: #{tpu_custom_call.1} parent=27 // pred_check_branch
          %196 = sbr.rel (%p194) target = $region32
        $region31: #{tpu_custom_call.1} parent=27 // pred_region
          %198 = dma.done %s190, 4096
        $region32: #{tpu_custom_call.1} parent=27 // pred_fallthru
          _
        // Predicated region
        $region33: #{tpu_custom_call.1} parent=27 // pred_check
          %p199 = pneg %p90
        $region34: #{tpu_custom_call.1} parent=27 // pred_check_branch
          %201 = sbr.rel (%p199) target = $region36
        $region35: #{tpu_custom_call.1} parent=27 // pred_region
          %203 = dma.done [#allocation6], 8192
        $region36: #{tpu_custom_call.1} parent=27 // pred_fallthru
          _
        %s204 = sand.u32 %s49, 1
        %s205 = scalar_lea.sflag [#allocation3], %s204
        %s206 = sand.u32 %s49, 1
        %s207 = smul.addr %s206, 256
        %s208 = scalar_lea.vmem [#allocation2], %s207
        %p209 = pneg %p62
        %p210 = pneg %p59
        %p211 = pneg %p90
        %p212 = pneg %p87
        %p213 = pneg %p118
        %p214 = pneg %p115
        %s215 = sand.u32 %s105, 1
        %s216 = scalar_lea.sflag [#allocation4], %s215
        %s217 = sand.u32 %s105, 1
        %s218 = smul.addr %s217, 256
        %s219 = scalar_lea.vmem [#allocation7], %s218
        %s220 = smul.u32 16, %s25
        %s221 = smul.u32 2, %s27
        %s222 = smul.u32 32, %s27
        %s223 = smul.u32 2, %s26
        %s224 = smul.u32 16, %s25
        %s225 = smul.u32 2, %s26
        %p226 = scmp.eq.s32.totalorder %s27, 0
        // Predicated region
        $region37: #{tpu_custom_call.1} parent=27 // pred_check
          %p227 = pneg %p226
        $region38: #{tpu_custom_call.1} parent=27 // pred_check_branch
          %229 = sbr.rel (%p227) target = $region40
        $region39: #{tpu_custom_call.1} parent=27 // pred_region
          %230 = vst [vmem:[%s219] sm:$0xff] 0.0
          %231 = vst [vmem:[%s219 + $0x8] sm:$0xff] 0.0
          %232 = vst [vmem:[%s219 + $0x10] sm:$0xff] 0.0
          %233 = vst [vmem:[%s219 + $0x18] sm:$0xff] 0.0
          %234 = vst [vmem:[%s219 + $0x20] sm:$0xff] 0.0
          %235 = vst [vmem:[%s219 + $0x28] sm:$0xff] 0.0
          %236 = vst [vmem:[%s219 + $0x30] sm:$0xff] 0.0
          %237 = vst [vmem:[%s219 + $0x38] sm:$0xff] 0.0
          %238 = vst [vmem:[%s219 + $0x40] sm:$0xff] 0.0
          %239 = vst [vmem:[%s219 + $0x48] sm:$0xff] 0.0
          %240 = vst [vmem:[%s219 + $0x50] sm:$0xff] 0.0
          %241 = vst [vmem:[%s219 + $0x58] sm:$0xff] 0.0
          %242 = vst [vmem:[%s219 + $0x60] sm:$0xff] 0.0
          %243 = vst [vmem:[%s219 + $0x68] sm:$0xff] 0.0
          %244 = vst [vmem:[%s219 + $0x70] sm:$0xff] 0.0
          %245 = vst [vmem:[%s219 + $0x78] sm:$0xff] 0.0
          %246 = vst [vmem:[%s219 + $0x80] sm:$0xff] 0.0
          %247 = vst [vmem:[%s219 + $0x88] sm:$0xff] 0.0
          %248 = vst [vmem:[%s219 + $0x90] sm:$0xff] 0.0
          %249 = vst [vmem:[%s219 + $0x98] sm:$0xff] 0.0
          %250 = vst [vmem:[%s219 + $0xa0] sm:$0xff] 0.0
          %251 = vst [vmem:[%s219 + $0xa8] sm:$0xff] 0.0
          %252 = vst [vmem:[%s219 + $0xb0] sm:$0xff] 0.0
          %253 = vst [vmem:[%s219 + $0xb8] sm:$0xff] 0.0
          %254 = vst [vmem:[%s219 + $0xc0] sm:$0xff] 0.0
          %255 = vst [vmem:[%s219 + $0xc8] sm:$0xff] 0.0
          %256 = vst [vmem:[%s219 + $0xd0] sm:$0xff] 0.0
          %257 = vst [vmem:[%s219 + $0xd8] sm:$0xff] 0.0
          %258 = vst [vmem:[%s219 + $0xe0] sm:$0xff] 0.0
          %259 = vst [vmem:[%s219 + $0xe8] sm:$0xff] 0.0
          %260 = vst [vmem:[%s219 + $0xf0] sm:$0xff] 0.0
          %261 = vst [vmem:[%s219 + $0xf8] sm:$0xff] 0.0
        $region40: #{tpu_custom_call.1} parent=27 // pred_fallthru
          _
        %v262 = vld [vmem:[%s219] sm:$0xff]
        %v263 = vld [vmem:[%s219 + $0x8] sm:$0xff]
        %v264 = vld [vmem:[%s219 + $0x10] sm:$0xff]
        %v265 = vld [vmem:[%s219 + $0x18] sm:$0xff]
        %v266 = vld [vmem:[%s219 + $0x20] sm:$0xff]
        %v267 = vld [vmem:[%s219 + $0x28] sm:$0xff]
        %v268 = vld [vmem:[%s219 + $0x30] sm:$0xff]
        %v269 = vld [vmem:[%s219 + $0x38] sm:$0xff]
        %v270 = vld [vmem:[%s219 + $0x40] sm:$0xff]
        %v271 = vld [vmem:[%s219 + $0x48] sm:$0xff]
        %v272 = vld [vmem:[%s219 + $0x50] sm:$0xff]
        %v273 = vld [vmem:[%s219 + $0x58] sm:$0xff]
        %v274 = vld [vmem:[%s219 + $0x60] sm:$0xff]
        %v275 = vld [vmem:[%s219 + $0x68] sm:$0xff]
        %v276 = vld [vmem:[%s219 + $0x70] sm:$0xff]
        %v277 = vld [vmem:[%s219 + $0x78] sm:$0xff]
        %v278 = vld [vmem:[%s219 + $0x80] sm:$0xff]
        %v279 = vld [vmem:[%s219 + $0x88] sm:$0xff]
        %v280 = vld [vmem:[%s219 + $0x90] sm:$0xff]
        %v281 = vld [vmem:[%s219 + $0x98] sm:$0xff]
        %v282 = vld [vmem:[%s219 + $0xa0] sm:$0xff]
        %v283 = vld [vmem:[%s219 + $0xa8] sm:$0xff]
        %v284 = vld [vmem:[%s219 + $0xb0] sm:$0xff]
        %v285 = vld [vmem:[%s219 + $0xb8] sm:$0xff]
        %v286 = vld [vmem:[%s219 + $0xc0] sm:$0xff]
        %v287 = vld [vmem:[%s219 + $0xc8] sm:$0xff]
        %v288 = vld [vmem:[%s219 + $0xd0] sm:$0xff]
        %v289 = vld [vmem:[%s219 + $0xd8] sm:$0xff]
        %v290 = vld [vmem:[%s219 + $0xe0] sm:$0xff]
        %v291 = vld [vmem:[%s219 + $0xe8] sm:$0xff]
        %v292 = vld [vmem:[%s219 + $0xf0] sm:$0xff]
        %v293 = vld [vmem:[%s219 + $0xf8] sm:$0xff]
        %v294 = vld [vmem:[%s193] sm:$0xff]
        %v295 = vld [vmem:[%s193 + $0x8] sm:$0xff]
        %v296 = vld [vmem:[%s193 + $0x10] sm:$0xff]
        %v297 = vld [vmem:[%s193 + $0x18] sm:$0xff]
        %v298 = vld [vmem:[%s193 + $0x20] sm:$0xff]
        %v299 = vld [vmem:[%s193 + $0x28] sm:$0xff]
        %v300 = vld [vmem:[%s193 + $0x30] sm:$0xff]
        %v301 = vld [vmem:[%s193 + $0x38] sm:$0xff]
        %v302 = vld [vmem:[%s193 + $0x40] sm:$0xff]
        %v303 = vld [vmem:[%s193 + $0x48] sm:$0xff]
        %v304 = vld [vmem:[%s193 + $0x50] sm:$0xff]
        %v305 = vld [vmem:[%s193 + $0x58] sm:$0xff]
        %v306 = vld [vmem:[%s193 + $0x60] sm:$0xff]
        %v307 = vld [vmem:[%s193 + $0x68] sm:$0xff]
        %v308 = vld [vmem:[%s193 + $0x70] sm:$0xff]
        %v309 = vld [vmem:[%s193 + $0x78] sm:$0xff]
        %v310 = vld [vmem:[%s193 + $0x80] sm:$0xff]
        %v311 = vld [vmem:[%s193 + $0x88] sm:$0xff]
        %v312 = vld [vmem:[%s193 + $0x90] sm:$0xff]
        %v313 = vld [vmem:[%s193 + $0x98] sm:$0xff]
        %v314 = vld [vmem:[%s193 + $0xa0] sm:$0xff]
        %v315 = vld [vmem:[%s193 + $0xa8] sm:$0xff]
        %v316 = vld [vmem:[%s193 + $0xb0] sm:$0xff]
        %v317 = vld [vmem:[%s193 + $0xb8] sm:$0xff]
        %v318 = vld [vmem:[%s193 + $0xc0] sm:$0xff]
        %v319 = vld [vmem:[%s193 + $0xc8] sm:$0xff]
        %v320 = vld [vmem:[%s193 + $0xd0] sm:$0xff]
        %v321 = vld [vmem:[%s193 + $0xd8] sm:$0xff]
        %v322 = vld [vmem:[%s193 + $0xe0] sm:$0xff]
        %v323 = vld [vmem:[%s193 + $0xe8] sm:$0xff]
        %v324 = vld [vmem:[%s193 + $0xf0] sm:$0xff]
        %v325 = vld [vmem:[%s193 + $0xf8] sm:$0xff]
        %v326 = vld [vmem:[#allocation5] sm:$0xff]
        %v327 = vld [vmem:[#allocation5 + $0x8] sm:$0xff]
        %v328 = vld [vmem:[#allocation5 + $0x10] sm:$0xff]
        %v329 = vld [vmem:[#allocation5 + $0x18] sm:$0xff]
        %v330 = vld [vmem:[#allocation5 + $0x20] sm:$0xff]
        %v331 = vld [vmem:[#allocation5 + $0x28] sm:$0xff]
        %v332 = vld [vmem:[#allocation5 + $0x30] sm:$0xff]
        %v333 = vld [vmem:[#allocation5 + $0x38] sm:$0xff]
        %v334 = vld [vmem:[#allocation5 + $0x40] sm:$0xff]
        %v335 = vld [vmem:[#allocation5 + $0x48] sm:$0xff]
        %v336 = vld [vmem:[#allocation5 + $0x50] sm:$0xff]
        %v337 = vld [vmem:[#allocation5 + $0x58] sm:$0xff]
        %v338 = vld [vmem:[#allocation5 + $0x60] sm:$0xff]
        %v339 = vld [vmem:[#allocation5 + $0x68] sm:$0xff]
        %v340 = vld [vmem:[#allocation5 + $0x70] sm:$0xff]
        %v341 = vld [vmem:[#allocation5 + $0x78] sm:$0xff]
        %v342 = vld [vmem:[#allocation5 + $0x80] sm:$0xff]
        %v343 = vld [vmem:[#allocation5 + $0x88] sm:$0xff]
        %v344 = vld [vmem:[#allocation5 + $0x90] sm:$0xff]
        %v345 = vld [vmem:[#allocation5 + $0x98] sm:$0xff]
        %v346 = vld [vmem:[#allocation5 + $0xa0] sm:$0xff]
        %v347 = vld [vmem:[#allocation5 + $0xa8] sm:$0xff]
        %v348 = vld [vmem:[#allocation5 + $0xb0] sm:$0xff]
        %v349 = vld [vmem:[#allocation5 + $0xb8] sm:$0xff]
        %v350 = vld [vmem:[#allocation5 + $0xc0] sm:$0xff]
        %v351 = vld [vmem:[#allocation5 + $0xc8] sm:$0xff]
        %v352 = vld [vmem:[#allocation5 + $0xd0] sm:$0xff]
        %v353 = vld [vmem:[#allocation5 + $0xd8] sm:$0xff]
        %v354 = vld [vmem:[#allocation5 + $0xe0] sm:$0xff]
        %v355 = vld [vmem:[#allocation5 + $0xe8] sm:$0xff]
        %v356 = vld [vmem:[#allocation5 + $0xf0] sm:$0xff]
        %v357 = vld [vmem:[#allocation5 + $0xf8] sm:$0xff]
        %v358 = vld [vmem:[#allocation5 + $0x100] sm:$0xff]
        %v359 = vld [vmem:[#allocation5 + $0x108] sm:$0xff]
        %v360 = vld [vmem:[#allocation5 + $0x110] sm:$0xff]
        %v361 = vld [vmem:[#allocation5 + $0x118] sm:$0xff]
        %v362 = vld [vmem:[#allocation5 + $0x120] sm:$0xff]
        %v363 = vld [vmem:[#allocation5 + $0x128] sm:$0xff]
        %v364 = vld [vmem:[#allocation5 + $0x130] sm:$0xff]
        %v365 = vld [vmem:[#allocation5 + $0x138] sm:$0xff]
        %v366 = vld [vmem:[#allocation5 + $0x140] sm:$0xff]
        %v367 = vld [vmem:[#allocation5 + $0x148] sm:$0xff]
        %v368 = vld [vmem:[#allocation5 + $0x150] sm:$0xff]
        %v369 = vld [vmem:[#allocation5 + $0x158] sm:$0xff]
        %v370 = vld [vmem:[#allocation5 + $0x160] sm:$0xff]
        %v371 = vld [vmem:[#allocation5 + $0x168] sm:$0xff]
        %v372 = vld [vmem:[#allocation5 + $0x170] sm:$0xff]
        %v373 = vld [vmem:[#allocation5 + $0x178] sm:$0xff]
        %v374 = vld [vmem:[#allocation5 + $0x180] sm:$0xff]
        %v375 = vld [vmem:[#allocation5 + $0x188] sm:$0xff]
        %v376 = vld [vmem:[#allocation5 + $0x190] sm:$0xff]
        %v377 = vld [vmem:[#allocation5 + $0x198] sm:$0xff]
        %v378 = vld [vmem:[#allocation5 + $0x1a0] sm:$0xff]
        %v379 = vld [vmem:[#allocation5 + $0x1a8] sm:$0xff]
        %v380 = vld [vmem:[#allocation5 + $0x1b0] sm:$0xff]
        %v381 = vld [vmem:[#allocation5 + $0x1b8] sm:$0xff]
        %v382 = vld [vmem:[#allocation5 + $0x1c0] sm:$0xff]
        %v383 = vld [vmem:[#allocation5 + $0x1c8] sm:$0xff]
        %v384 = vld [vmem:[#allocation5 + $0x1d0] sm:$0xff]
        %v385 = vld [vmem:[#allocation5 + $0x1d8] sm:$0xff]
        %v386 = vld [vmem:[#allocation5 + $0x1e0] sm:$0xff]
        %v387 = vld [vmem:[#allocation5 + $0x1e8] sm:$0xff]
        %v388 = vld [vmem:[#allocation5 + $0x1f0] sm:$0xff]
        %v389 = vld [vmem:[#allocation5 + $0x1f8] sm:$0xff]
        %390 = vmatpush.msra.mxu0 %v356
        %391 = vmatpush.msra.mxu0 %v354
        %392 = vmatpush.msra.mxu0 %v352
        %393 = vmatpush.msra.mxu0 %v350
        %394 = vmatpush.msra.mxu0 %v348
        %395 = vmatpush.msra.mxu0 %v346
        %396 = vmatpush.msra.mxu0 %v344
        %397 = vmatpush.msra.mxu0 %v342
        %398 = vmatpush.msra.mxu0 %v340
        %399 = vmatpush.msra.mxu0 %v338
        %400 = vmatpush.msra.mxu0 %v336
        %401 = vmatpush.msra.mxu0 %v334
        %402 = vmatpush.msra.mxu0 %v332
        %403 = vmatpush.msra.mxu0 %v330
        %404 = vmatpush.msra.mxu0 %v328
        %405 = vmatpush.msra.mxu0 %v326
        %406 = vmatmul.f32.gmra.mxu0 %v294
        %v407 = vpop.f32.mrf.mxu0
        %v408 = vadd.f32 0.0, %v407
        %409 = vmatmul.f32.gmra.mxu0 %v296
        %v410 = vpop.f32.mrf.mxu0
        %v411 = vadd.f32 0.0, %v410
        %412 = vmatmul.f32.gmra.mxu0 %v298
        %v413 = vpop.f32.mrf.mxu0
        %v414 = vadd.f32 0.0, %v413
        %415 = vmatmul.f32.gmra.mxu0 %v300
        %v416 = vpop.f32.mrf.mxu0
        %v417 = vadd.f32 0.0, %v416
        %418 = vmatmul.f32.gmra.mxu0 %v302
        %v419 = vpop.f32.mrf.mxu0
        %v420 = vadd.f32 0.0, %v419
        %421 = vmatmul.f32.gmra.mxu0 %v304
        %v422 = vpop.f32.mrf.mxu0
        %v423 = vadd.f32 0.0, %v422
        %424 = vmatmul.f32.gmra.mxu0 %v306
        %v425 = vpop.f32.mrf.mxu0
        %v426 = vadd.f32 0.0, %v425
        %427 = vmatmul.f32.gmra.mxu0 %v308
        %v428 = vpop.f32.mrf.mxu0
        %v429 = vadd.f32 0.0, %v428
        %430 = vmatmul.f32.gmra.mxu0 %v310
        %v431 = vpop.f32.mrf.mxu0
        %v432 = vadd.f32 0.0, %v431
        %433 = vmatmul.f32.gmra.mxu0 %v312
        %v434 = vpop.f32.mrf.mxu0
        %v435 = vadd.f32 0.0, %v434
        %436 = vmatmul.f32.gmra.mxu0 %v314
        %v437 = vpop.f32.mrf.mxu0
        %v438 = vadd.f32 0.0, %v437
        %439 = vmatmul.f32.gmra.mxu0 %v316
        %v440 = vpop.f32.mrf.mxu0
        %v441 = vadd.f32 0.0, %v440
        %442 = vmatmul.f32.gmra.mxu0 %v318
        %v443 = vpop.f32.mrf.mxu0
        %v444 = vadd.f32 0.0, %v443
        %445 = vmatmul.f32.gmra.mxu0 %v320
        %v446 = vpop.f32.mrf.mxu0
        %v447 = vadd.f32 0.0, %v446
        %448 = vmatmul.f32.gmra.mxu0 %v322
        %v449 = vpop.f32.mrf.mxu0
        %v450 = vadd.f32 0.0, %v449
        %451 = vmatmul.f32.gmra.mxu0 %v324
        %v452 = vpop.f32.mrf.mxu0
        %v453 = vadd.f32 0.0, %v452
        %454 = vdwg.mxu0
        %455 = vmatpush.msra.mxu0 %v388
        %456 = vmatpush.msra.mxu0 %v386
        %457 = vmatpush.msra.mxu0 %v384
        %458 = vmatpush.msra.mxu0 %v382
        %459 = vmatpush.msra.mxu0 %v380
        %460 = vmatpush.msra.mxu0 %v378
        %461 = vmatpush.msra.mxu0 %v376
        %462 = vmatpush.msra.mxu0 %v374
        %463 = vmatpush.msra.mxu0 %v372
        %464 = vmatpush.msra.mxu0 %v370
        %465 = vmatpush.msra.mxu0 %v368
        %466 = vmatpush.msra.mxu0 %v366
        %467 = vmatpush.msra.mxu0 %v364
        %468 = vmatpush.msra.mxu0 %v362
        %469 = vmatpush.msra.mxu0 %v360
        %470 = vmatpush.msra.mxu0 %v358
        %471 = vmatmul.f32.gmra.mxu0 %v295
        %v472 = vpop.f32.mrf.mxu0
        %v473 = vadd.f32 %v408, %v472
        %474 = vmatmul.f32.gmra.mxu0 %v297
        %v475 = vpop.f32.mrf.mxu0
        %v476 = vadd.f32 %v411, %v475
        %477 = vmatmul.f32.gmra.mxu0 %v299
        %v478 = vpop.f32.mrf.mxu0
        %v479 = vadd.f32 %v414, %v478
        %480 = vmatmul.f32.gmra.mxu0 %v301
        %v481 = vpop.f32.mrf.mxu0
        %v482 = vadd.f32 %v417, %v481
        %483 = vmatmul.f32.gmra.mxu0 %v303
        %v484 = vpop.f32.mrf.mxu0
        %v485 = vadd.f32 %v420, %v484
        %486 = vmatmul.f32.gmra.mxu0 %v305
        %v487 = vpop.f32.mrf.mxu0
        %v488 = vadd.f32 %v423, %v487
        %489 = vmatmul.f32.gmra.mxu0 %v307
        %v490 = vpop.f32.mrf.mxu0
        %v491 = vadd.f32 %v426, %v490
        %492 = vmatmul.f32.gmra.mxu0 %v309
        %v493 = vpop.f32.mrf.mxu0
        %v494 = vadd.f32 %v429, %v493
        %495 = vmatmul.f32.gmra.mxu0 %v311
        %v496 = vpop.f32.mrf.mxu0
        %v497 = vadd.f32 %v432, %v496
        %498 = vmatmul.f32.gmra.mxu0 %v313
        %v499 = vpop.f32.mrf.mxu0
        %v500 = vadd.f32 %v435, %v499
        %501 = vmatmul.f32.gmra.mxu0 %v315
        %v502 = vpop.f32.mrf.mxu0
        %v503 = vadd.f32 %v438, %v502
        %504 = vmatmul.f32.gmra.mxu0 %v317
        %v505 = vpop.f32.mrf.mxu0
        %v506 = vadd.f32 %v441, %v505
        %507 = vmatmul.f32.gmra.mxu0 %v319
        %v508 = vpop.f32.mrf.mxu0
        %v509 = vadd.f32 %v444, %v508
        %510 = vmatmul.f32.gmra.mxu0 %v321
        %v511 = vpop.f32.mrf.mxu0
        %v512 = vadd.f32 %v447, %v511
        %513 = vmatmul.f32.gmra.mxu0 %v323
        %v514 = vpop.f32.mrf.mxu0
        %v515 = vadd.f32 %v450, %v514
        %516 = vmatmul.f32.gmra.mxu0 %v325
        %v517 = vpop.f32.mrf.mxu0
        %v518 = vadd.f32 %v453, %v517
        %519 = vdwg.mxu0
        %520 = vmatpush.msra.mxu0 %v357
        %521 = vmatpush.msra.mxu0 %v355
        %522 = vmatpush.msra.mxu0 %v353
        %523 = vmatpush.msra.mxu0 %v351
        %524 = vmatpush.msra.mxu0 %v349
        %525 = vmatpush.msra.mxu0 %v347
        %526 = vmatpush.msra.mxu0 %v345
        %527 = vmatpush.msra.mxu0 %v343
        %528 = vmatpush.msra.mxu0 %v341
        %529 = vmatpush.msra.mxu0 %v339
        %530 = vmatpush.msra.mxu0 %v337
        %531 = vmatpush.msra.mxu0 %v335
        %532 = vmatpush.msra.mxu0 %v333
        %533 = vmatpush.msra.mxu0 %v331
        %534 = vmatpush.msra.mxu0 %v329
        %535 = vmatpush.msra.mxu0 %v327
        %536 = vmatmul.f32.gmra.mxu0 %v294
        %v537 = vpop.f32.mrf.mxu0
        %v538 = vadd.f32 0.0, %v537
        %539 = vmatmul.f32.gmra.mxu0 %v296
        %v540 = vpop.f32.mrf.mxu0
        %v541 = vadd.f32 0.0, %v540
        %542 = vmatmul.f32.gmra.mxu0 %v298
        %v543 = vpop.f32.mrf.mxu0
        %v544 = vadd.f32 0.0, %v543
        %545 = vmatmul.f32.gmra.mxu0 %v300
        %v546 = vpop.f32.mrf.mxu0
        %v547 = vadd.f32 0.0, %v546
        %548 = vmatmul.f32.gmra.mxu0 %v302
        %v549 = vpop.f32.mrf.mxu0
        %v550 = vadd.f32 0.0, %v549
        %551 = vmatmul.f32.gmra.mxu0 %v304
        %v552 = vpop.f32.mrf.mxu0
        %v553 = vadd.f32 0.0, %v552
        %554 = vmatmul.f32.gmra.mxu0 %v306
        %v555 = vpop.f32.mrf.mxu0
        %v556 = vadd.f32 0.0, %v555
        %557 = vmatmul.f32.gmra.mxu0 %v308
        %v558 = vpop.f32.mrf.mxu0
        %v559 = vadd.f32 0.0, %v558
        %560 = vmatmul.f32.gmra.mxu0 %v310
        %v561 = vpop.f32.mrf.mxu0
        %v562 = vadd.f32 0.0, %v561
        %563 = vmatmul.f32.gmra.mxu0 %v312
        %v564 = vpop.f32.mrf.mxu0
        %v565 = vadd.f32 0.0, %v564
        %566 = vmatmul.f32.gmra.mxu0 %v314
        %v567 = vpop.f32.mrf.mxu0
        %v568 = vadd.f32 0.0, %v567
        %569 = vmatmul.f32.gmra.mxu0 %v316
        %v570 = vpop.f32.mrf.mxu0
        %v571 = vadd.f32 0.0, %v570
        %572 = vmatmul.f32.gmra.mxu0 %v318
        %v573 = vpop.f32.mrf.mxu0
        %v574 = vadd.f32 0.0, %v573
        %575 = vmatmul.f32.gmra.mxu0 %v320
        %v576 = vpop.f32.mrf.mxu0
        %v577 = vadd.f32 0.0, %v576
        %578 = vmatmul.f32.gmra.mxu0 %v322
        %v579 = vpop.f32.mrf.mxu0
        %v580 = vadd.f32 0.0, %v579
        %581 = vmatmul.f32.gmra.mxu0 %v324
        %v582 = vpop.f32.mrf.mxu0
        %v583 = vadd.f32 0.0, %v582
        %584 = vdwg.mxu0
        %585 = vmatpush.msra.mxu0 %v389
        %586 = vmatpush.msra.mxu0 %v387
        %587 = vmatpush.msra.mxu0 %v385
        %588 = vmatpush.msra.mxu0 %v383
        %589 = vmatpush.msra.mxu0 %v381
        %590 = vmatpush.msra.mxu0 %v379
        %591 = vmatpush.msra.mxu0 %v377
        %592 = vmatpush.msra.mxu0 %v375
        %593 = vmatpush.msra.mxu0 %v373
        %594 = vmatpush.msra.mxu0 %v371
        %595 = vmatpush.msra.mxu0 %v369
        %596 = vmatpush.msra.mxu0 %v367
        %597 = vmatpush.msra.mxu0 %v365
        %598 = vmatpush.msra.mxu0 %v363
        %599 = vmatpush.msra.mxu0 %v361
        %600 = vmatpush.msra.mxu0 %v359
        %601 = vmatmul.f32.gmra.mxu0 %v295
        %v602 = vpop.f32.mrf.mxu0
        %v603 = vadd.f32 %v538, %v602
        %604 = vmatmul.f32.gmra.mxu0 %v297
        %v605 = vpop.f32.mrf.mxu0
        %v606 = vadd.f32 %v541, %v605
        %607 = vmatmul.f32.gmra.mxu0 %v299
        %v608 = vpop.f32.mrf.mxu0
        %v609 = vadd.f32 %v544, %v608
        %610 = vmatmul.f32.gmra.mxu0 %v301
        %v611 = vpop.f32.mrf.mxu0
        %v612 = vadd.f32 %v547, %v611
        %613 = vmatmul.f32.gmra.mxu0 %v303
        %v614 = vpop.f32.mrf.mxu0
        %v615 = vadd.f32 %v550, %v614
        %616 = vmatmul.f32.gmra.mxu0 %v305
        %v617 = vpop.f32.mrf.mxu0
        %v618 = vadd.f32 %v553, %v617
        %619 = vmatmul.f32.gmra.mxu0 %v307
        %v620 = vpop.f32.mrf.mxu0
        %v621 = vadd.f32 %v556, %v620
        %622 = vmatmul.f32.gmra.mxu0 %v309
        %v623 = vpop.f32.mrf.mxu0
        %v624 = vadd.f32 %v559, %v623
        %625 = vmatmul.f32.gmra.mxu0 %v311
        %v626 = vpop.f32.mrf.mxu0
        %v627 = vadd.f32 %v562, %v626
        %628 = vmatmul.f32.gmra.mxu0 %v313
        %v629 = vpop.f32.mrf.mxu0
        %v630 = vadd.f32 %v565, %v629
        %631 = vmatmul.f32.gmra.mxu0 %v315
        %v632 = vpop.f32.mrf.mxu0
        %v633 = vadd.f32 %v568, %v632
        %634 = vmatmul.f32.gmra.mxu0 %v317
        %v635 = vpop.f32.mrf.mxu0
        %v636 = vadd.f32 %v571, %v635
        %637 = vmatmul.f32.gmra.mxu0 %v319
        %v638 = vpop.f32.mrf.mxu0
        %v639 = vadd.f32 %v574, %v638
        %640 = vmatmul.f32.gmra.mxu0 %v321
        %v641 = vpop.f32.mrf.mxu0
        %v642 = vadd.f32 %v577, %v641
        %643 = vmatmul.f32.gmra.mxu0 %v323
        %v644 = vpop.f32.mrf.mxu0
        %v645 = vadd.f32 %v580, %v644
        %646 = vmatmul.f32.gmra.mxu0 %v325
        %v647 = vpop.f32.mrf.mxu0
        %v648 = vadd.f32 %v583, %v647
        %649 = vdwg.mxu0
        %v650 = vadd.f32 %v262, %v473
        %v651 = vadd.f32 %v263, %v603
        %v652 = vadd.f32 %v264, %v476
        %v653 = vadd.f32 %v265, %v606
        %v654 = vadd.f32 %v266, %v479
        %v655 = vadd.f32 %v267, %v609
        %v656 = vadd.f32 %v268, %v482
        %v657 = vadd.f32 %v269, %v612
        %v658 = vadd.f32 %v270, %v485
        %v659 = vadd.f32 %v271, %v615
        %v660 = vadd.f32 %v272, %v488
        %v661 = vadd.f32 %v273, %v618
        %v662 = vadd.f32 %v274, %v491
        %v663 = vadd.f32 %v275, %v621
        %v664 = vadd.f32 %v276, %v494
        %v665 = vadd.f32 %v277, %v624
        %v666 = vadd.f32 %v278, %v497
        %v667 = vadd.f32 %v279, %v627
        %v668 = vadd.f32 %v280, %v500
        %v669 = vadd.f32 %v281, %v630
        %v670 = vadd.f32 %v282, %v503
        %v671 = vadd.f32 %v283, %v633
        %v672 = vadd.f32 %v284, %v506
        %v673 = vadd.f32 %v285, %v636
        %v674 = vadd.f32 %v286, %v509
        %v675 = vadd.f32 %v287, %v639
        %v676 = vadd.f32 %v288, %v512
        %v677 = vadd.f32 %v289, %v642
        %v678 = vadd.f32 %v290, %v515
        %v679 = vadd.f32 %v291, %v645
        %v680 = vadd.f32 %v292, %v518
        %v681 = vadd.f32 %v293, %v648
        %682 = vst [vmem:[%s219] sm:$0xff] %v650
        %683 = vst [vmem:[%s219 + $0x8] sm:$0xff] %v651
        %684 = vst [vmem:[%s219 + $0x10] sm:$0xff] %v652
        %685 = vst [vmem:[%s219 + $0x18] sm:$0xff] %v653
        %686 = vst [vmem:[%s219 + $0x20] sm:$0xff] %v654
        %687 = vst [vmem:[%s219 + $0x28] sm:$0xff] %v655
        %688 = vst [vmem:[%s219 + $0x30] sm:$0xff] %v656
        %689 = vst [vmem:[%s219 + $0x38] sm:$0xff] %v657
        %690 = vst [vmem:[%s219 + $0x40] sm:$0xff] %v658
        %691 = vst [vmem:[%s219 + $0x48] sm:$0xff] %v659
        %692 = vst [vmem:[%s219 + $0x50] sm:$0xff] %v660
        %693 = vst [vmem:[%s219 + $0x58] sm:$0xff] %v661
        %694 = vst [vmem:[%s219 + $0x60] sm:$0xff] %v662
        %695 = vst [vmem:[%s219 + $0x68] sm:$0xff] %v663
        %696 = vst [vmem:[%s219 + $0x70] sm:$0xff] %v664
        %697 = vst [vmem:[%s219 + $0x78] sm:$0xff] %v665
        %698 = vst [vmem:[%s219 + $0x80] sm:$0xff] %v666
        %699 = vst [vmem:[%s219 + $0x88] sm:$0xff] %v667
        %700 = vst [vmem:[%s219 + $0x90] sm:$0xff] %v668
        %701 = vst [vmem:[%s219 + $0x98] sm:$0xff] %v669
        %702 = vst [vmem:[%s219 + $0xa0] sm:$0xff] %v670
        %703 = vst [vmem:[%s219 + $0xa8] sm:$0xff] %v671
        %704 = vst [vmem:[%s219 + $0xb0] sm:$0xff] %v672
        %705 = vst [vmem:[%s219 + $0xb8] sm:$0xff] %v673
        %706 = vst [vmem:[%s219 + $0xc0] sm:$0xff] %v674
        %707 = vst [vmem:[%s219 + $0xc8] sm:$0xff] %v675
        %708 = vst [vmem:[%s219 + $0xd0] sm:$0xff] %v676
        %709 = vst [vmem:[%s219 + $0xd8] sm:$0xff] %v677
        %710 = vst [vmem:[%s219 + $0xe0] sm:$0xff] %v678
        %711 = vst [vmem:[%s219 + $0xe8] sm:$0xff] %v679
        %712 = vst [vmem:[%s219 + $0xf0] sm:$0xff] %v680
        %713 = vst [vmem:[%s219 + $0xf8] sm:$0xff] %v681
        %s714 = sand.u32 %s105, 1
        %s715 = scalar_lea.sflag [#allocation4], %s714
        %s716 = sand.u32 %s105, 1
        %s717 = smul.addr %s716, 256
        %s718 = scalar_lea.vmem [#allocation7], %s717
        // Predicated region
        $region41: #{tpu_custom_call.1} parent=27 // pred_check
          %p719 = pneg %p115
        $region42: #{tpu_custom_call.1} parent=27 // pred_check_branch
          %721 = sbr.rel (%p719) target = $region44
        $region43: #{tpu_custom_call.1} parent=27 // pred_region
          %s722 = smul.u32 16, %s25
          %s723 = smul.u32 2, %s26
          %725 = vsyncadd %s715, 0
          %s726 = smul.addr %s722, 2
          %s727 = sadd.s32 %s723, %s726
          %s728 = smul.addr %s727, 8
          %s729 = scalar_lea.hbm %s2, %s728
          %s730 = sshll.u32 %s718, 4
          %s731 = int_to_ptr.vmem [resolvable:$true] %s730
          %s732 = sshll.u32 %s729, 4
          %s733 = int_to_ptr.hbm [resolvable:$true] %s732
          %738 = dma.vmem_to_hbm [thread:$0]  %s731, 4096, %s733, %s715, 256, 256, 16
        $region44: #{tpu_custom_call.1} parent=27 // pred_fallthru
          _
      $region28: #{tpu_custom_call.1} parent=5 // pred_fallthru
        _
      %p739 = scmp.le.s32.totalorder 2, %s15
      // Predicated region
      $region45: #{tpu_custom_call.1} parent=5 // pred_check
        %p740 = pneg %p739
      $region46: #{tpu_custom_call.1} parent=5 // pred_check_branch
        %742 = sbr.rel (%p740) target = $region48
      $region47: #{tpu_custom_call.1} parent=5 // pred_region
        %s743 = ssub.s32 %s15, 2
        // Predicated region
        $region49: #{tpu_custom_call.1} parent=47 // pred_check
          %p744 = pneg %p121
        $region50: #{tpu_custom_call.1} parent=47 // pred_check_branch
          %746 = sbr.rel (%p744) target = $region52
        $region51: #{tpu_custom_call.1} parent=47 // pred_region
          %s747 = sand.u32 %s106, 1
          %s748 = scalar_lea.sflag [#allocation4], %s747
          %s749 = sand.u32 %s106, 1
          %s750 = smul.addr %s749, 256
          %s751 = scalar_lea.vmem [#allocation7], %s750
          %753 = dma.done %s748, 4096
        $region52: #{tpu_custom_call.1} parent=47 // pred_fallthru
          _
      $region48: #{tpu_custom_call.1} parent=5 // pred_fallthru
        _
    $region6: #{tpu_custom_call.1} parent=1 // loop_footer
      %s19 = sadd.s32 1, %s15
    $region7: #{tpu_custom_call.1} parent=1 // loop_footer_branch
      %14 = sbr.rel target = $region3
    $region8: #{tpu_custom_call.1} parent=1 // loop_exit
      _
    %754 = vsyncpa [#allocation3], 1
    %s755 = scalar_lea.sflag [#allocation3], 1
    %756 = vsyncpa %s755, 1
    %757 = vsyncpa [#allocation6], 1
    %758 = vsyncpa [#allocation4], 1
    %s759 = scalar_lea.sflag [#allocation4], 1
    %760 = vsyncpa %s759, 1

</llo_original>
